<compile_context>
chip_gen: v7x
topology: tpu7x:2x2x1
jax: 0.10.0
libtpu: 0.0.40
codegen_flags: <defaults>
</compile_context>

<pallas_src>
import functools

import jax
import jax.numpy as jnp
from jax.experimental import pallas as pl
from jax.experimental.pallas import tpu as pltpu


def _round_up(x, m):
    return ((x + m - 1) // m) * m


def _gru_step_kernel(h_ref, x_ref,
                     wzr_h_ref, wzr_x_ref,
                     wt_h_ref, wt_x_ref,
                     out_ref):
    h = h_ref[...]                        # (bn, H) f32
    x = x_ref[...]                        # (bn, I) f32
    # Downcast only the matmul operands (MXU); keep element-wise math in f32.
    h_lo = h.astype(wzr_h_ref.dtype)
    x_lo = x.astype(wzr_x_ref.dtype)

    hidden = out_ref.shape[-1]

    # Fused z|r gates: one (bn, 2H) matmul pair instead of four small dots.
    zr = (jnp.dot(h_lo, wzr_h_ref[...], preferred_element_type=jnp.float32) +
          jnp.dot(x_lo, wzr_x_ref[...], preferred_element_type=jnp.float32))
    zr = jax.nn.sigmoid(zr)               # f32 element-wise
    z = zr[:, :hidden]
    r = zr[:, hidden:]

    # t = tanh([r*h, x] @ Wt)
    rh_lo = (r * h).astype(wt_h_ref.dtype)
    t_pre = (jnp.dot(rh_lo, wt_h_ref[...], preferred_element_type=jnp.float32) +
             jnp.dot(x_lo, wt_x_ref[...], preferred_element_type=jnp.float32))
    t = jnp.tanh(t_pre)

    out_ref[...] = ((1.0 - z) * h + z * t).astype(out_ref.dtype)


def prepare_gru_weights(wz, wr, wt, hidden_size, compute_dtype=jnp.bfloat16):
    """One-time transform of PyTorch-layout weights into the kernel layout.

    wz/wr/wt: (H, H + I) nn.Linear weights (bias=False).
    Returns (wzr_h, wzr_x, wt_h, wt_x) with shapes
      (H, 2H), (I, 2H), (H, H), (I, H), cast to `compute_dtype`.
    Call once at model setup, NOT once per GRU step.
    """
    h = hidden_size

    def split(w):
        w_t = w.T                          # (H + I, H): linear(cat) == h@Wh + x@Wx
        return w_t[:h, :], w_t[h:, :]

    wz_h, wz_x = split(wz)
    wr_h, wr_x = split(wr)
    wt_h, wt_x = split(wt)
    wzr_h = jnp.concatenate([wz_h, wr_h], axis=-1).astype(compute_dtype)   # (H, 2H)
    wzr_x = jnp.concatenate([wz_x, wr_x], axis=-1).astype(compute_dtype)   # (I, 2H)
    return wzr_h, wzr_x, wt_h.astype(compute_dtype), wt_x.astype(compute_dtype)


@functools.partial(jax.jit, static_argnames=("block_n",))
def gru_step(inp, h_state, wzr_h, wzr_x, wt_h, wt_x, *, block_n=256):
    """Pallas GRUStep.

    inp: (N, I) f32, h_state: (N, H) f32, weights from prepare_gru_weights.
    Returns the new hidden state, shape (N, H), dtype of h_state.
    """
    n, i_dim = inp.shape
    _, h_dim = h_state.shape

    # MXU-row-aligned batch tile; shrink for tiny batches, keep a multiple of 8.
    bn = _round_up(max(1, min(block_n, n)), 8)
    grid = (pl.cdiv(n, bn),)

    h_spec = pl.BlockSpec((bn, h_dim), lambda i: (i, 0))
    x_spec = pl.BlockSpec((bn, i_dim), lambda i: (i, 0))
    # Grid-invariant weight blocks (constant index_map -> DMA'd only once).
    # TODO(synk): single-buffer these via pipeline_mode=pl.Buffered(1) to halve
    # their VMEM footprint once that path is verified on all target jaxlibs.
    wzr_h_spec = pl.BlockSpec((h_dim, 2 * h_dim), lambda i: (0, 0))
    wzr_x_spec = pl.BlockSpec((i_dim, 2 * h_dim), lambda i: (0, 0))
    wt_h_spec = pl.BlockSpec((h_dim, h_dim), lambda i: (0, 0))
    wt_x_spec = pl.BlockSpec((i_dim, h_dim), lambda i: (0, 0))

    w_itemsize = jnp.dtype(wzr_h.dtype).itemsize
    w_bytes = (wzr_h.size + wzr_x.size + wt_h.size + wt_x.size) * w_itemsize
    io_bytes = (n * h_dim + n * i_dim + n * h_dim) * 4

    # VMEM budget (sized to also fit v7x's 64 MiB physical / 32 MiB scoped
    # default): double-buffered activations + weights + f32 temporaries.
    vmem_est = (2 * w_bytes
                + 2 * (bn * h_dim + bn * i_dim + bn * h_dim) * 4
                + 8 * bn * h_dim * 4)
    vmem_limit = int(min(max(2 * vmem_est, 8 * 1024 * 1024), 64 * 1024 * 1024))

    cost = pl.CostEstimate(
        flops=2 * n * (h_dim + i_dim) * (3 * h_dim),
        transcendentals=3 * n * h_dim,
        bytes_accessed=int(w_bytes + io_bytes),
    )

    return pl.pallas_call(
        _gru_step_kernel,
        out_shape=jax.ShapeDtypeStruct((n, h_dim), h_state.dtype),
        grid_spec=pltpu.PrefetchScalarGridSpec(
            num_scalar_prefetch=0,
            grid=grid,
            in_specs=[h_spec, x_spec,
                      wzr_h_spec, wzr_x_spec,
                      wt_h_spec, wt_x_spec],
            out_specs=h_spec,
        ),
        # In-place hidden-state update when the caller donates h_state.
        input_output_aliases={0: 0},
        compiler_params=pltpu.CompilerParams(
            dimension_semantics=("parallel",),   # v7x: shard batch over 2 TCs
            vmem_limit_bytes=vmem_limit,
        ),
        cost_estimate=cost,
    )(h_state, inp, wzr_h, wzr_x, wt_h, wt_x)


def gru_step_ref(inp, h_state, wz, wr, wt):
    """Pure-JAX f32 reference matching the PyTorch forward exactly."""
    cat = jnp.concatenate([h_state, inp], axis=-1)
    z = jax.nn.sigmoid(cat @ wz.T)
    r = jax.nn.sigmoid(cat @ wr.T)
    cat_t = jnp.concatenate([r * h_state, inp], axis=-1)
    t = jnp.tanh(cat_t @ wt.T)
    return (1.0 - z) * h_state + z * t


def gru_step_ref_matched(inp, h_state, wzr_h, wzr_x, wt_h, wt_x):
    """Reference with the same bf16-operand / f32-accumulation numerics as the kernel."""
    hdim = h_state.shape[-1]
    h_lo = h_state.astype(wzr_h.dtype)
    x_lo = inp.astype(wzr_x.dtype)
    zr = jax.nn.sigmoid(
        jnp.dot(h_lo, wzr_h, preferred_element_type=jnp.float32) +
        jnp.dot(x_lo, wzr_x, preferred_element_type=jnp.float32))
    z, r = zr[:, :hdim], zr[:, hdim:]
    rh_lo = (r * h_state).astype(wt_h.dtype)
    t = jnp.tanh(
        jnp.dot(rh_lo, wt_h, preferred_element_type=jnp.float32) +
        jnp.dot(x_lo, wt_x, preferred_element_type=jnp.float32))
    return (1.0 - z) * h_state + z * t


if __name__ == "__main__":
    key = jax.random.PRNGKey(0)
    # Small demo shapes; hidden_size is a multiple of 128 so the output /
    # weight lane axis is dense (pad H at model setup in real use).
    batch, input_size, hidden_size = 4, 64, 128

    k_x, k_h, k_wz, k_wr, k_wt = jax.random.split(key, 5)
    x = jax.random.normal(k_x, (batch, input_size), dtype=jnp.float32)
    h = jax.random.normal(k_h, (batch, hidden_size), dtype=jnp.float32)

    # Deterministic init mimicking nn.Linear: U(-1/sqrt(fan_in), 1/sqrt(fan_in)),
    # weight shape (out_features, in_features) = (H, H + I), bias=False.
    fan_in = hidden_size + input_size
    bound = 1.0 / (fan_in ** 0.5)
    wz = jax.random.uniform(k_wz, (hidden_size, fan_in), jnp.float32, -bound, bound)
    wr = jax.random.uniform(k_wr, (hidden_size, fan_in), jnp.float32, -bound, bound)
    wt = jax.random.uniform(k_wt, (hidden_size, fan_in), jnp.float32, -bound, bound)

    # References (computed before the kernel; the kernel aliases h_state -> out).
    ref_f32 = gru_step_ref(x, h, wz, wr, wt)

    # One-time weight preparation (fused z|r gates, (in, out) layout, bf16).
    wzr_h, wzr_x, wth, wtx = prepare_gru_weights(
        wz, wr, wt, hidden_size, compute_dtype=jnp.bfloat16)
    ref_matched = gru_step_ref_matched(x, h, wzr_h, wzr_x, wth, wtx)

    out = gru_step(x, h, wzr_h, wzr_x, wth, wtx, block_n=256)
    out = jax.block_until_ready(out)

    assert out.shape == (batch, hidden_size)
    # Tight check vs a reference using the same bf16-operand numerics.
    assert jnp.allclose(out, ref_matched, atol=1e-4, rtol=1e-4), \
        "mismatch vs matched-precision reference"
    # Loose check vs the pure-f32 PyTorch-equivalent reference (bf16 MXU operands).
    assert jnp.allclose(out, ref_f32, atol=2e-2, rtol=2e-2), \
        "mismatch vs f32 reference"

    print("KERNEL_OK")
</pallas_src>

<mosaic_0001>
module attributes {stable_mosaic.version = 11 : i64} {
  func.func @_gru_step_kernel(%arg0: i32, %arg1: memref<8x128xf32, #tpu.memory_space<vmem>>, %arg2: memref<8x64xf32, #tpu.memory_space<vmem>>, %arg3: memref<128x256xbf16, #tpu.memory_space<vmem>>, %arg4: memref<64x256xbf16, #tpu.memory_space<vmem>>, %arg5: memref<128x128xbf16, #tpu.memory_space<vmem>>, %arg6: memref<64x128xbf16, #tpu.memory_space<vmem>>, %arg7: memref<8x128xf32, #tpu.memory_space<vmem>>) attributes {dimension_semantics = [#tpu.dimension_semantics<parallel>], iteration_bounds = array<i64: 1>, scalar_prefetch = 0 : i64, scratch_operands = 0 : i64, tpu.core_type = #tpu.core_type<tc>, window_params = [{transform_indices = @transform_0, window_bounds = array<i64: 8, 128>}, {transform_indices = @transform_1, window_bounds = array<i64: 8, 64>}, {pipeline_mode = #tpu.pipeline_mode<synchronous>, transform_indices = @transform_2, window_bounds = array<i64: 128, 256>}, {pipeline_mode = #tpu.pipeline_mode<synchronous>, transform_indices = @transform_3, window_bounds = array<i64: 64, 256>}, {pipeline_mode = #tpu.pipeline_mode<synchronous>, transform_indices = @transform_4, window_bounds = array<i64: 128, 128>}, {pipeline_mode = #tpu.pipeline_mode<synchronous>, transform_indices = @transform_5, window_bounds = array<i64: 64, 128>}, {transform_indices = @transform_6, window_bounds = array<i64: 8, 128>}]} {
    %c0 = arith.constant 0 : index
    %c0_0 = arith.constant 0 : index
    %0 = vector.load %arg1[%c0, %c0_0] : memref<8x128xf32, #tpu.memory_space<vmem>>, vector<8x128xf32>
    %c0_1 = arith.constant 0 : index
    %c0_2 = arith.constant 0 : index
    %1 = vector.load %arg2[%c0_1, %c0_2] : memref<8x64xf32, #tpu.memory_space<vmem>>, vector<8x64xf32>
    %2 = arith.truncf %0 : vector<8x128xf32> to vector<8x128xbf16>
    %3 = arith.truncf %1 : vector<8x64xf32> to vector<8x64xbf16>
    %c0_3 = arith.constant 0 : index
    %c0_4 = arith.constant 0 : index
    %4 = vector.load %arg3[%c0_3, %c0_4] : memref<128x256xbf16, #tpu.memory_space<vmem>>, vector<128x256xbf16>
    %cst = arith.constant dense<0.000000e+00> : vector<8x256xf32>
    %5 = tpu.matmul %2, %4, %cst {dimension_numbers = #tpu.dot_dimension_numbers<[1], [0], [0], [1], [0, 0, 1, 1], [], []>} : vector<8x128xbf16>, vector<128x256xbf16>, vector<8x256xf32> -> vector<8x256xf32>
    %c0_5 = arith.constant 0 : index
    %c0_6 = arith.constant 0 : index
    %6 = vector.load %arg4[%c0_5, %c0_6] : memref<64x256xbf16, #tpu.memory_space<vmem>>, vector<64x256xbf16>
    %cst_7 = arith.constant dense<0.000000e+00> : vector<8x256xf32>
    %7 = tpu.matmul %3, %6, %cst_7 {dimension_numbers = #tpu.dot_dimension_numbers<[1], [0], [0], [1], [0, 0, 1, 1], [], []>} : vector<8x64xbf16>, vector<64x256xbf16>, vector<8x256xf32> -> vector<8x256xf32>
    %8 = arith.addf %5, %7 : vector<8x256xf32>
    %9 = arith.negf %8 : vector<8x256xf32>
    %10 = math.exp %9 : vector<8x256xf32>
    %cst_8 = arith.constant 1.000000e+00 : f32
    %11 = vector.broadcast %cst_8 : f32 to vector<8x256xf32>
    %12 = arith.addf %11, %10 : vector<8x256xf32>
    %13 = arith.divf %11, %12 : vector<8x256xf32>
    %14 = vector.extract_strided_slice %13 {offsets = [0, 0], sizes = [8, 128], strides = [1, 1]} : vector<8x256xf32> to vector<8x128xf32>
    %15 = vector.extract_strided_slice %13 {offsets = [0, 128], sizes = [8, 128], strides = [1, 1]} : vector<8x256xf32> to vector<8x128xf32>
    %16 = arith.mulf %15, %0 : vector<8x128xf32>
    %17 = arith.truncf %16 : vector<8x128xf32> to vector<8x128xbf16>
    %c0_9 = arith.constant 0 : index
    %c0_10 = arith.constant 0 : index
    %18 = vector.load %arg5[%c0_9, %c0_10] : memref<128x128xbf16, #tpu.memory_space<vmem>>, vector<128x128xbf16>
    %cst_11 = arith.constant dense<0.000000e+00> : vector<8x128xf32>
    %19 = tpu.matmul %17, %18, %cst_11 {dimension_numbers = #tpu.dot_dimension_numbers<[1], [0], [0], [1], [0, 0, 1, 1], [], []>} : vector<8x128xbf16>, vector<128x128xbf16>, vector<8x128xf32> -> vector<8x128xf32>
    %c0_12 = arith.constant 0 : index
    %c0_13 = arith.constant 0 : index
    %20 = vector.load %arg6[%c0_12, %c0_13] : memref<64x128xbf16, #tpu.memory_space<vmem>>, vector<64x128xbf16>
    %cst_14 = arith.constant dense<0.000000e+00> : vector<8x128xf32>
    %21 = tpu.matmul %3, %20, %cst_14 {dimension_numbers = #tpu.dot_dimension_numbers<[1], [0], [0], [1], [0, 0, 1, 1], [], []>} : vector<8x64xbf16>, vector<64x128xbf16>, vector<8x128xf32> -> vector<8x128xf32>
    %22 = arith.addf %19, %21 : vector<8x128xf32>
    %23 = math.tanh %22 : vector<8x128xf32>
    %cst_15 = arith.constant 1.000000e+00 : f32
    %24 = vector.broadcast %cst_15 : f32 to vector<8x128xf32>
    %25 = arith.subf %24, %14 : vector<8x128xf32>
    %26 = arith.mulf %25, %0 : vector<8x128xf32>
    %27 = arith.mulf %14, %23 : vector<8x128xf32>
    %28 = arith.addf %26, %27 : vector<8x128xf32>
    %c0_16 = arith.constant 0 : index
    %c0_17 = arith.constant 0 : index
    %29 = vector.load %arg7[%c0_16, %c0_17] : memref<8x128xf32, #tpu.memory_space<vmem>>, vector<8x128xf32>
    tpu.vector_store %arg7[%c0_16, %c0_17], %28 {strides = array<i32>} : memref<8x128xf32, #tpu.memory_space<vmem>>, vector<8x128xf32>,
    return
  }
  func.func @transform_0(%arg0: i32) -> (i32, i32) {
    %c0_i32 = arith.constant 0 : i32
    %c0_i32_0 = arith.constant 0 : i32
    return %arg0, %c0_i32 : i32, i32
  }
  func.func @transform_1(%arg0: i32) -> (i32, i32) {
    %c0_i32 = arith.constant 0 : i32
    %c0_i32_0 = arith.constant 0 : i32
    return %arg0, %c0_i32 : i32, i32
  }
  func.func @transform_2(%arg0: i32) -> (i32, i32) {
    %c0_i32 = arith.constant 0 : i32
    %c0_i32_0 = arith.constant 0 : i32
    %c0_i32_1 = arith.constant 0 : i32
    return %c0_i32, %c0_i32_0 : i32, i32
  }
  func.func @transform_3(%arg0: i32) -> (i32, i32) {
    %c0_i32 = arith.constant 0 : i32
    %c0_i32_0 = arith.constant 0 : i32
    %c0_i32_1 = arith.constant 0 : i32
    return %c0_i32, %c0_i32_0 : i32, i32
  }
  func.func @transform_4(%arg0: i32) -> (i32, i32) {
    %c0_i32 = arith.constant 0 : i32
    %c0_i32_0 = arith.constant 0 : i32
    %c0_i32_1 = arith.constant 0 : i32
    return %c0_i32, %c0_i32_0 : i32, i32
  }
  func.func @transform_5(%arg0: i32) -> (i32, i32) {
    %c0_i32 = arith.constant 0 : i32
    %c0_i32_0 = arith.constant 0 : i32
    %c0_i32_1 = arith.constant 0 : i32
    return %c0_i32, %c0_i32_0 : i32, i32
  }
  func.func @transform_6(%arg0: i32) -> (i32, i32) {
    %c0_i32 = arith.constant 0 : i32
    %c0_i32_0 = arith.constant 0 : i32
    return %arg0, %c0_i32 : i32, i32
  }
}

</mosaic_0001>

<llo_original>
// kernel: gru_step.1
$region0: #{gru_step.1}
  #allocation0 [shape = 'u32[]', space=smem, size = 0x4, offset = 0x4, fixed_abs, tag = 'smem constant byte address 0x4 - core index']
  #allocation1 [shape = 'u32[144,128]{1,0:T(1,128)}', space=vmem, size = 0x12000, scoped, tag = 'internal scratch']
  %s0 = inlined_call_operand.hbm [shape: f32[4,128], index: 0, kind: input, shape index: {}, may-alias: {0,6}]
  %s1 = inlined_call_operand.vmem [shape: f32[4,64], index: 1, kind: input, shape index: {}]
  %s2 = inlined_call_operand.hbm [shape: bf16[128,256], index: 2, kind: input, shape index: {}]
  %s3 = inlined_call_operand.hbm [shape: bf16[64,256], index: 3, kind: input, shape index: {}]
  %s4 = inlined_call_operand.hbm [shape: bf16[128,128], index: 4, kind: input, shape index: {}]
  %s5 = inlined_call_operand.hbm [shape: bf16[64,128], index: 5, kind: input, shape index: {}]
  %s6 = inlined_call_operand.hbm [shape: f32[4,128], index: 6, kind: output, shape index: {}, may-alias: {0,6}]
  %s7 = sld [smem:[#allocation0]]
  $region54: #{gru_step.1} parent=0
    _
  %s9 = ssub.s32 1, %s7
  %s10 = scalar_select 0, %s9, %s7
  $region1: #{gru_step.1} parent=0
    #allocation2 [shape = 'u8[4096]{0}', space=vmem, size = 0x1000, scoped, tag = 'input window, operand 0, single buffered']
    #allocation3 [shape = 's32[1]{0}', space=sflag, size = 0x4, scoped, tag = 'scoped memory for gru_step.1']
    #allocation4 [shape = 's32[1]{0}', space=sflag, size = 0x4, scoped, tag = 'scoped memory for gru_step.1']
    #allocation5 [shape = 'u8[65536]{0}', space=vmem, size = 0x10000, scoped, tag = 'input window, operand 2, single buffered']
    #allocation6 [shape = 's32[1]{0}', space=sflag, size = 0x4, scoped, tag = 'scoped memory for gru_step.1']
    #allocation7 [shape = 'u8[32768]{0}', space=vmem, size = 0x8000, scoped, tag = 'input window, operand 3, single buffered']
    #allocation8 [shape = 'u8[32768]{0}', space=vmem, size = 0x8000, scoped, tag = 'input window, operand 4, single buffered']
    #allocation9 [shape = 's32[1]{0}', space=sflag, size = 0x4, scoped, tag = 'scoped memory for gru_step.1']
    #allocation10 [shape = 'u8[16384]{0}', space=vmem, size = 0x4000, scoped, tag = 'input window, operand 5, single buffered']
    #allocation11 [shape = 'u8[4096]{0}', space=vmem, size = 0x1000, scoped, tag = 'output window, operand 0, single buffered']
    %11 = vsyncpa [#allocation3], 0
    %12 = vsyncpa [#allocation6], 0
    %13 = vsyncpa [#allocation9], 0
    %14 = vsyncpa [#allocation4], 0
    // Predicated region
    $region2: #{gru_step.1} parent=1 // pred_check
      _
    $region3: #{gru_step.1} parent=1 // pred_check_branch
      %16 = sbr.rel (0) target = $region5
    $region4: #{gru_step.1} parent=1 // pred_region
      %s18 = ssub.s32 128, 64
      %19 = vsyncadd [#allocation3], %s18
      %s20 = sshll.u32 [#allocation2], 4
      %s21 = int_to_ptr.vmem [resolvable:$true] %s20
      %26 = dma.hbm_to_vmem [thread:$0]  %s0, 64, %s21, [#allocation3], 64, 64, 4
    $region5: #{gru_step.1} parent=1 // pred_fallthru
      _
    // Predicated region
    $region6: #{gru_step.1} parent=1 // pred_check
      _
    $region7: #{gru_step.1} parent=1 // pred_check_branch
      %28 = sbr.rel (0) target = $region9
    $region8: #{gru_step.1} parent=1 // pred_region
      _
    $region9: #{gru_step.1} parent=1 // pred_fallthru
      _
    // Predicated region
    $region10: #{gru_step.1} parent=1 // pred_check
      _
    $region11: #{gru_step.1} parent=1 // pred_check_branch
      %30 = sbr.rel (0) target = $region13
    $region12: #{gru_step.1} parent=1 // pred_region
      %s32 = ssub.s32 2048, 2048
      %33 = vsyncadd [#allocation6], %s32
      %s34 = sshll.u32 [#allocation5], 4
      %s35 = int_to_ptr.vmem [resolvable:$true] %s34
      %40 = dma.hbm_to_vmem [thread:$0]  %s2, 2048, %s35, [#allocation6], 128, 128, 8
    $region13: #{gru_step.1} parent=1 // pred_fallthru
      _
    // Predicated region
    $region14: #{gru_step.1} parent=1 // pred_check
      _
    $region15: #{gru_step.1} parent=1 // pred_check_branch
      %42 = sbr.rel (0) target = $region17
    $region16: #{gru_step.1} parent=1 // pred_region
      %s44 = ssub.s32 1024, 1024
      %45 = vsyncadd [#allocation6], %s44
      %s46 = sshll.u32 [#allocation7], 4
      %s47 = int_to_ptr.vmem [resolvable:$true] %s46
      %52 = dma.hbm_to_vmem [thread:$0]  %s3, 1024, %s47, [#allocation6], 128, 128, 8
    $region17: #{gru_step.1} parent=1 // pred_fallthru
      _
    // Predicated region
    $region18: #{gru_step.1} parent=1 // pred_check
      _
    $region19: #{gru_step.1} parent=1 // pred_check_branch
      %54 = sbr.rel (0) target = $region21
    $region20: #{gru_step.1} parent=1 // pred_region
      %s56 = ssub.s32 1024, 1024
      %57 = vsyncadd [#allocation9], %s56
      %s58 = sshll.u32 [#allocation8], 4
      %s59 = int_to_ptr.vmem [resolvable:$true] %s58
      %64 = dma.hbm_to_vmem [thread:$0]  %s4, 1024, %s59, [#allocation9], 64, 64, 4
    $region21: #{gru_step.1} parent=1 // pred_fallthru
      _
    // Predicated region
    $region22: #{gru_step.1} parent=1 // pred_check
      _
    $region23: #{gru_step.1} parent=1 // pred_check_branch
      %66 = sbr.rel (0) target = $region25
    $region24: #{gru_step.1} parent=1 // pred_region
      %s68 = ssub.s32 512, 512
      %69 = vsyncadd [#allocation9], %s68
      %s70 = sshll.u32 [#allocation10], 4
      %s71 = int_to_ptr.vmem [resolvable:$true] %s70
      %76 = dma.hbm_to_vmem [thread:$0]  %s5, 512, %s71, [#allocation9], 64, 64, 4
    $region25: #{gru_step.1} parent=1 // pred_fallthru
      _
    // Predicated region
    $region26: #{gru_step.1} parent=1 // pred_check
      _
    $region27: #{gru_step.1} parent=1 // pred_check_branch
      %78 = sbr.rel (0) target = $region29
    $region28: #{gru_step.1} parent=1 // pred_region
      %79 = dma.done [#allocation3], 128
    $region29: #{gru_step.1} parent=1 // pred_fallthru
      _
    // Predicated region
    $region30: #{gru_step.1} parent=1 // pred_check
      _
    $region31: #{gru_step.1} parent=1 // pred_check_branch
      %81 = sbr.rel (0) target = $region33
    $region32: #{gru_step.1} parent=1 // pred_region
      %82 = dma.done [#allocation6], 2048
    $region33: #{gru_step.1} parent=1 // pred_fallthru
      _
    // Predicated region
    $region34: #{gru_step.1} parent=1 // pred_check
      _
    $region35: #{gru_step.1} parent=1 // pred_check_branch
      %84 = sbr.rel (0) target = $region37
    $region36: #{gru_step.1} parent=1 // pred_region
      %85 = dma.done [#allocation6], 1024
    $region37: #{gru_step.1} parent=1 // pred_fallthru
      _
    // Predicated region
    $region38: #{gru_step.1} parent=1 // pred_check
      _
    $region39: #{gru_step.1} parent=1 // pred_check_branch
      %87 = sbr.rel (0) target = $region41
    $region40: #{gru_step.1} parent=1 // pred_region
      %88 = dma.done [#allocation9], 1024
    $region41: #{gru_step.1} parent=1 // pred_fallthru
      _
    // Predicated region
    $region42: #{gru_step.1} parent=1 // pred_check
      _
    $region43: #{gru_step.1} parent=1 // pred_check_branch
      %90 = sbr.rel (0) target = $region45
    $region44: #{gru_step.1} parent=1 // pred_region
      %91 = dma.done [#allocation9], 512
    $region45: #{gru_step.1} parent=1 // pred_fallthru
      _
    %v93 = vld [vmem:[#allocation2] sm:$0xff]
    %v94 = vld [vmem:[%s1] sm:$0xff]
    %v95 = vpack.c.bf16 %v93, %v93
    %v96 = vpack.c.bf16 %v94, %v94
    %v97 = vld [vmem:[#allocation5] sm:$0xff]
    %v98 = vld [vmem:[#allocation5 + $0x8] sm:$0xff]
    %v99 = vld [vmem:[#allocation5 + $0x10] sm:$0xff]
    %v100 = vld [vmem:[#allocation5 + $0x18] sm:$0xff]
    %v101 = vld [vmem:[#allocation5 + $0x20] sm:$0xff]
    %v102 = vld [vmem:[#allocation5 + $0x28] sm:$0xff]
    %v103 = vld [vmem:[#allocation5 + $0x30] sm:$0xff]
    %v104 = vld [vmem:[#allocation5 + $0x38] sm:$0xff]
    %v105 = vld [vmem:[#allocation5 + $0x40] sm:$0xff]
    %v106 = vld [vmem:[#allocation5 + $0x48] sm:$0xff]
    %v107 = vld [vmem:[#allocation5 + $0x50] sm:$0xff]
    %v108 = vld [vmem:[#allocation5 + $0x58] sm:$0xff]
    %v109 = vld [vmem:[#allocation5 + $0x60] sm:$0xff]
    %v110 = vld [vmem:[#allocation5 + $0x68] sm:$0xff]
    %v111 = vld [vmem:[#allocation5 + $0x70] sm:$0xff]
    %v112 = vld [vmem:[#allocation5 + $0x78] sm:$0xff]
    %v113 = vld [vmem:[#allocation7] sm:$0xff]
    %v114 = vld [vmem:[#allocation7 + $0x8] sm:$0xff]
    %v115 = vld [vmem:[#allocation7 + $0x10] sm:$0xff]
    %v116 = vld [vmem:[#allocation7 + $0x18] sm:$0xff]
    %v117 = vld [vmem:[#allocation7 + $0x20] sm:$0xff]
    %v118 = vld [vmem:[#allocation7 + $0x28] sm:$0xff]
    %v119 = vld [vmem:[#allocation7 + $0x30] sm:$0xff]
    %v120 = vld [vmem:[#allocation7 + $0x38] sm:$0xff]
    %v129 = vunpack.c.l.b16 %v113
    %v130 = vunpack.c.h.b16 %v113
    %v131 = vunpack.c.l.b16 %v114
    %v132 = vunpack.c.h.b16 %v114
    %v133 = vunpack.c.l.b16 %v115
    %v134 = vunpack.c.h.b16 %v115
    %v135 = vunpack.c.l.b16 %v116
    %v136 = vunpack.c.h.b16 %v116
    %v137 = vunpack.c.l.b16 %v117
    %v138 = vunpack.c.h.b16 %v117
    %v139 = vunpack.c.l.b16 %v118
    %v140 = vunpack.c.h.b16 %v118
    %v141 = vunpack.c.l.b16 %v119
    %v142 = vunpack.c.h.b16 %v119
    %v143 = vunpack.c.l.b16 %v120
    %v144 = vunpack.c.h.b16 %v120
    %v145 = vpack.c.b16 %v131, %v129
    %v146 = vpack.c.b16 %v132, %v130
    %v147 = vpack.c.b16 %v135, %v133
    %v148 = vpack.c.b16 %v136, %v134
    %v149 = vpack.c.b16 %v139, %v137
    %v150 = vpack.c.b16 %v140, %v138
    %v151 = vpack.c.b16 %v143, %v141
    %v152 = vpack.c.b16 %v144, %v142
    %vm161 = vcmask 523264
    %v163 = vsel %vm161, %v96, 0
    %165 = vmatprep.subr.bf16.mxu0 %v146
    %166 = vmatpush1.bf16.msra.mxu0 %v145
    %167 = vmatprep.subr.bf16.mxu0 %v148
    %168 = vmatpush1.bf16.msra.mxu0 %v147
    %169 = vmatprep.subr.bf16.mxu0 %v150
    %170 = vmatpush1.bf16.msra.mxu0 %v149
    %171 = vmatprep.subr.bf16.mxu0 %v152
    %172 = vmatpush1.bf16.msra.mxu0 %v151
    %173 = vmatprep.subr.bf16.mxu0 0
    %174 = vmatpush1.bf16.msra.mxu0 0
    %175 = vmatprep.subr.bf16.mxu0 0
    %176 = vmatpush1.bf16.msra.mxu0 0
    %177 = vmatprep.subr.bf16.mxu0 0
    %178 = vmatpush1.bf16.msra.mxu0 0
    %179 = vmatprep.subr.bf16.mxu0 0
    %180 = vmatpush1.bf16.msra.mxu0 0
    %181 = vmatprep.subr.bf16.mxu0 0
    %182 = vmatpush1.bf16.msra.mxu0 0
    %183 = vmatprep.subr.bf16.mxu0 0
    %184 = vmatpush1.bf16.msra.mxu0 0
    %185 = vmatprep.subr.bf16.mxu0 0
    %186 = vmatpush1.bf16.msra.mxu0 0
    %187 = vmatprep.subr.bf16.mxu0 0
    %188 = vmatpush1.bf16.msra.mxu0 0
    %189 = vmatprep.subr.bf16.mxu0 0
    %190 = vmatpush1.bf16.msra.mxu0 0
    %191 = vmatprep.subr.bf16.mxu0 0
    %192 = vmatpush1.bf16.msra.mxu0 0
    %193 = vmatprep.subr.bf16.mxu0 0
    %194 = vmatpush1.bf16.msra.mxu0 0
    %195 = vmatprep.subr.bf16.mxu0 0
    %196 = vmatpush1.bf16.msra.mxu0 0
    %197 = vmatprep.mubr.bf16.mxu0 0
    %198 = vmatmul.mubr.bf16.gmra.mrb[0].mxu0 %v163
    %v199 = vpop.f32.mrb[0].mxu0
    %v200 = vadd.f32 0.0, %v199
    %v201 = vpop.f32.mrb[0].mxu0
    %v202 = vadd.f32 0.0, %v201
    %v203 = vpop.f32.mrb[0].mxu0
    %v204 = vpop.f32.mrb[0].mxu0
    %205 = vdwg.mxu0
    %v222 = vunpack.c.l.b16 %v97
    %v223 = vunpack.c.h.b16 %v97
    %v224 = vunpack.c.l.b16 %v98
    %v225 = vunpack.c.h.b16 %v98
    %v226 = vunpack.c.l.b16 %v99
    %v227 = vunpack.c.h.b16 %v99
    %v228 = vunpack.c.l.b16 %v100
    %v229 = vunpack.c.h.b16 %v100
    %v230 = vunpack.c.l.b16 %v101
    %v231 = vunpack.c.h.b16 %v101
    %v232 = vunpack.c.l.b16 %v102
    %v233 = vunpack.c.h.b16 %v102
    %v234 = vunpack.c.l.b16 %v103
    %v235 = vunpack.c.h.b16 %v103
    %v236 = vunpack.c.l.b16 %v104
    %v237 = vunpack.c.h.b16 %v104
    %v238 = vunpack.c.l.b16 %v105
    %v239 = vunpack.c.h.b16 %v105
    %v240 = vunpack.c.l.b16 %v106
    %v241 = vunpack.c.h.b16 %v106
    %v242 = vunpack.c.l.b16 %v107
    %v243 = vunpack.c.h.b16 %v107
    %v244 = vunpack.c.l.b16 %v108
    %v245 = vunpack.c.h.b16 %v108
    %v246 = vunpack.c.l.b16 %v109
    %v247 = vunpack.c.h.b16 %v109
    %v248 = vunpack.c.l.b16 %v110
    %v249 = vunpack.c.h.b16 %v110
    %v250 = vunpack.c.l.b16 %v111
    %v251 = vunpack.c.h.b16 %v111
    %v252 = vunpack.c.l.b16 %v112
    %v253 = vunpack.c.h.b16 %v112
    %v254 = vpack.c.b16 %v224, %v222
    %v255 = vpack.c.b16 %v225, %v223
    %v256 = vpack.c.b16 %v228, %v226
    %v257 = vpack.c.b16 %v229, %v227
    %v258 = vpack.c.b16 %v232, %v230
    %v259 = vpack.c.b16 %v233, %v231
    %v260 = vpack.c.b16 %v236, %v234
    %v261 = vpack.c.b16 %v237, %v235
    %v262 = vpack.c.b16 %v240, %v238
    %v263 = vpack.c.b16 %v241, %v239
    %v264 = vpack.c.b16 %v244, %v242
    %v265 = vpack.c.b16 %v245, %v243
    %v266 = vpack.c.b16 %v248, %v246
    %v267 = vpack.c.b16 %v249, %v247
    %v268 = vpack.c.b16 %v252, %v250
    %v269 = vpack.c.b16 %v253, %v251
    %286 = vmatprep.subr.bf16.mxu0 %v255
    %287 = vmatpush1.bf16.msra.mxu0 %v254
    %288 = vmatprep.subr.bf16.mxu0 %v257
    %289 = vmatpush1.bf16.msra.mxu0 %v256
    %290 = vmatprep.subr.bf16.mxu0 %v259
    %291 = vmatpush1.bf16.msra.mxu0 %v258
    %292 = vmatprep.subr.bf16.mxu0 %v261
    %293 = vmatpush1.bf16.msra.mxu0 %v260
    %294 = vmatprep.subr.bf16.mxu0 %v263
    %295 = vmatpush1.bf16.msra.mxu0 %v262
    %296 = vmatprep.subr.bf16.mxu0 %v265
    %297 = vmatpush1.bf16.msra.mxu0 %v264
    %298 = vmatprep.subr.bf16.mxu0 %v267
    %299 = vmatpush1.bf16.msra.mxu0 %v266
    %300 = vmatprep.subr.bf16.mxu0 %v269
    %301 = vmatpush1.bf16.msra.mxu0 %v268
    %302 = vmatprep.subr.bf16.mxu0 0
    %303 = vmatpush1.bf16.msra.mxu0 0
    %304 = vmatprep.subr.bf16.mxu0 0
    %305 = vmatpush1.bf16.msra.mxu0 0
    %306 = vmatprep.subr.bf16.mxu0 0
    %307 = vmatpush1.bf16.msra.mxu0 0
    %308 = vmatprep.subr.bf16.mxu0 0
    %309 = vmatpush1.bf16.msra.mxu0 0
    %310 = vmatprep.subr.bf16.mxu0 0
    %311 = vmatpush1.bf16.msra.mxu0 0
    %312 = vmatprep.subr.bf16.mxu0 0
    %313 = vmatpush1.bf16.msra.mxu0 0
    %314 = vmatprep.subr.bf16.mxu0 0
    %315 = vmatpush1.bf16.msra.mxu0 0
    %316 = vmatprep.subr.bf16.mxu0 0
    %317 = vmatpush1.bf16.msra.mxu0 0
    %318 = vmatprep.mubr.bf16.mxu0 0
    %319 = vmatmul.mubr.bf16.gmra.mrb[0].mxu0 %v95
    %v320 = vpop.f32.mrb[0].mxu0
    %v321 = vadd.f32 %v200, %v320
    %v322 = vpop.f32.mrb[0].mxu0
    %v323 = vadd.f32 %v202, %v322
    %v324 = vpop.f32.mrb[0].mxu0
    %v325 = vpop.f32.mrb[0].mxu0
    %326 = vdwg.mxu0
    %v327 = vxor.u32 %v321, 2147483648
    %v328 = vxor.u32 %v323, 2147483648
    %v329 = vmul.f32 %v327, 1.442695
    %v330 = vpow.pop %v329
    %v331 = vmul.f32 %v328, 1.442695
    %v332 = vpow.pop %v331
    %v333 = vadd.f32 %v330, 1.0
    %v334 = vadd.f32 %v332, 1.0
    %v335 = vrcp.pop %v333
    %v336 = vmul.f32 1.0, %v335
    %v337 = vrcp.pop %v334
    %v338 = vmul.f32 1.0, %v337
    %v339 = vmul.f32 %v338, %v93
    %v340 = vpack.c.bf16 %v339, %v339
    %v341 = vld [vmem:[#allocation8] sm:$0xf]
    %v342 = vld [vmem:[#allocation8 + $0x4] sm:$0xf]
    %v343 = vld [vmem:[#allocation8 + $0x8] sm:$0xf]
    %v344 = vld [vmem:[#allocation8 + $0xc] sm:$0xf]
    %v345 = vld [vmem:[#allocation8 + $0x10] sm:$0xf]
    %v346 = vld [vmem:[#allocation8 + $0x14] sm:$0xf]
    %v347 = vld [vmem:[#allocation8 + $0x18] sm:$0xf]
    %v348 = vld [vmem:[#allocation8 + $0x1c] sm:$0xf]
    %v349 = vld [vmem:[#allocation8 + $0x20] sm:$0xf]
    %v350 = vld [vmem:[#allocation8 + $0x24] sm:$0xf]
    %v351 = vld [vmem:[#allocation8 + $0x28] sm:$0xf]
    %v352 = vld [vmem:[#allocation8 + $0x2c] sm:$0xf]
    %v353 = vld [vmem:[#allocation8 + $0x30] sm:$0xf]
    %v354 = vld [vmem:[#allocation8 + $0x34] sm:$0xf]
    %v355 = vld [vmem:[#allocation8 + $0x38] sm:$0xf]
    %v356 = vld [vmem:[#allocation8 + $0x3c] sm:$0xf]
    %v357 = vld [vmem:[#allocation10] sm:$0xf]
    %v358 = vld [vmem:[#allocation10 + $0x4] sm:$0xf]
    %v359 = vld [vmem:[#allocation10 + $0x8] sm:$0xf]
    %v360 = vld [vmem:[#allocation10 + $0xc] sm:$0xf]
    %v361 = vld [vmem:[#allocation10 + $0x10] sm:$0xf]
    %v362 = vld [vmem:[#allocation10 + $0x14] sm:$0xf]
    %v363 = vld [vmem:[#allocation10 + $0x18] sm:$0xf]
    %v364 = vld [vmem:[#allocation10 + $0x1c] sm:$0xf]
    %v373 = vunpack.c.l.b16 %v357
    %v374 = vunpack.c.l.b16 %v358
    %v375 = vunpack.c.l.b16 %v359
    %v376 = vunpack.c.l.b16 %v360
    %v377 = vunpack.c.l.b16 %v361
    %v378 = vunpack.c.l.b16 %v362
    %v379 = vunpack.c.l.b16 %v363
    %v380 = vunpack.c.l.b16 %v364
    %v381 = vpack.c.b16 %v374, %v373
    %v382 = vpack.c.b16 %v376, %v375
    %v383 = vpack.c.b16 %v378, %v377
    %v384 = vpack.c.b16 %v380, %v379
    %389 = vmatprep.subr.bf16.mxu0 0
    %390 = vmatpush1.bf16.msra.mxu0 %v381
    %391 = vmatprep.subr.bf16.mxu0 0
    %392 = vmatpush1.bf16.msra.mxu0 %v382
    %393 = vmatprep.subr.bf16.mxu0 0
    %394 = vmatpush1.bf16.msra.mxu0 %v383
    %395 = vmatprep.subr.bf16.mxu0 0
    %396 = vmatpush1.bf16.msra.mxu0 %v384
    %397 = vmatprep.subr.bf16.mxu0 0
    %398 = vmatpush1.bf16.msra.mxu0 0
    %399 = vmatprep.subr.bf16.mxu0 0
    %400 = vmatpush1.bf16.msra.mxu0 0
    %401 = vmatprep.subr.bf16.mxu0 0
    %402 = vmatpush1.bf16.msra.mxu0 0
    %403 = vmatprep.subr.bf16.mxu0 0
    %404 = vmatpush1.bf16.msra.mxu0 0
    %405 = vmatprep.subr.bf16.mxu0 0
    %406 = vmatpush1.bf16.msra.mxu0 0
    %407 = vmatprep.subr.bf16.mxu0 0
    %408 = vmatpush1.bf16.msra.mxu0 0
    %409 = vmatprep.subr.bf16.mxu0 0
    %410 = vmatpush1.bf16.msra.mxu0 0
    %411 = vmatprep.subr.bf16.mxu0 0
    %412 = vmatpush1.bf16.msra.mxu0 0
    %413 = vmatprep.subr.bf16.mxu0 0
    %414 = vmatpush1.bf16.msra.mxu0 0
    %415 = vmatprep.subr.bf16.mxu0 0
    %416 = vmatpush1.bf16.msra.mxu0 0
    %417 = vmatprep.subr.bf16.mxu0 0
    %418 = vmatpush1.bf16.msra.mxu0 0
    %419 = vmatprep.subr.bf16.mxu0 0
    %420 = vmatpush1.bf16.msra.mxu0 0
    %421 = vmatprep.mubr.bf16.mxu0 0
    %422 = vmatmul.mubr.bf16.gmra.mrb[0].mxu0 %v163
    %v423 = vpop.f32.mrb[0].mxu0
    %v424 = vadd.f32 0.0, %v423
    %v425 = vpop.f32.mrb[0].mxu0
    %v426 = vpop.f32.mrb[0].mxu0
    %v427 = vpop.f32.mrb[0].mxu0
    %428 = vdwg.mxu0
    %v445 = vunpack.c.l.b16 %v341
    %v446 = vunpack.c.l.b16 %v342
    %v447 = vunpack.c.l.b16 %v343
    %v448 = vunpack.c.l.b16 %v344
    %v449 = vunpack.c.l.b16 %v345
    %v450 = vunpack.c.l.b16 %v346
    %v451 = vunpack.c.l.b16 %v347
    %v452 = vunpack.c.l.b16 %v348
    %v453 = vunpack.c.l.b16 %v349
    %v454 = vunpack.c.l.b16 %v350
    %v455 = vunpack.c.l.b16 %v351
    %v456 = vunpack.c.l.b16 %v352
    %v457 = vunpack.c.l.b16 %v353
    %v458 = vunpack.c.l.b16 %v354
    %v459 = vunpack.c.l.b16 %v355
    %v460 = vunpack.c.l.b16 %v356
    %v461 = vpack.c.b16 %v446, %v445
    %v462 = vpack.c.b16 %v448, %v447
    %v463 = vpack.c.b16 %v450, %v449
    %v464 = vpack.c.b16 %v452, %v451
    %v465 = vpack.c.b16 %v454, %v453
    %v466 = vpack.c.b16 %v456, %v455
    %v467 = vpack.c.b16 %v458, %v457
    %v468 = vpack.c.b16 %v460, %v459
    %477 = vmatprep.subr.bf16.mxu0 0
    %478 = vmatpush1.bf16.msra.mxu0 %v461
    %479 = vmatprep.subr.bf16.mxu0 0
    %480 = vmatpush1.bf16.msra.mxu0 %v462
    %481 = vmatprep.subr.bf16.mxu0 0
    %482 = vmatpush1.bf16.msra.mxu0 %v463
    %483 = vmatprep.subr.bf16.mxu0 0
    %484 = vmatpush1.bf16.msra.mxu0 %v464
    %485 = vmatprep.subr.bf16.mxu0 0
    %486 = vmatpush1.bf16.msra.mxu0 %v465
    %487 = vmatprep.subr.bf16.mxu0 0
    %488 = vmatpush1.bf16.msra.mxu0 %v466
    %489 = vmatprep.subr.bf16.mxu0 0
    %490 = vmatpush1.bf16.msra.mxu0 %v467
    %491 = vmatprep.subr.bf16.mxu0 0
    %492 = vmatpush1.bf16.msra.mxu0 %v468
    %493 = vmatprep.subr.bf16.mxu0 0
    %494 = vmatpush1.bf16.msra.mxu0 0
    %495 = vmatprep.subr.bf16.mxu0 0
    %496 = vmatpush1.bf16.msra.mxu0 0
    %497 = vmatprep.subr.bf16.mxu0 0
    %498 = vmatpush1.bf16.msra.mxu0 0
    %499 = vmatprep.subr.bf16.mxu0 0
    %500 = vmatpush1.bf16.msra.mxu0 0
    %501 = vmatprep.subr.bf16.mxu0 0
    %502 = vmatpush1.bf16.msra.mxu0 0
    %503 = vmatprep.subr.bf16.mxu0 0
    %504 = vmatpush1.bf16.msra.mxu0 0
    %505 = vmatprep.subr.bf16.mxu0 0
    %506 = vmatpush1.bf16.msra.mxu0 0
    %507 = vmatprep.subr.bf16.mxu0 0
    %508 = vmatpush1.bf16.msra.mxu0 0
    %509 = vmatprep.mubr.bf16.mxu0 0
    %510 = vmatmul.mubr.bf16.gmra.mrb[0].mxu0 %v340
    %v511 = vpop.f32.mrb[0].mxu0
    %v512 = vadd.f32 %v424, %v511
    %v513 = vpop.f32.mrb[0].mxu0
    %v514 = vpop.f32.mrb[0].mxu0
    %v515 = vpop.f32.mrb[0].mxu0
    %516 = vdwg.mxu0
    %v517 = vtanh.pop %v512
    %v518 = vsub.f32 1.0, %v336
    %v519 = vmul.f32 %v518, %v93
    %v520 = vmul.f32 %v336, %v517
    %v521 = vadd.f32 %v519, %v520
    %522 = vst [vmem:[#allocation11] sm:$0xff] %v521
    // Predicated region
    $region46: #{gru_step.1} parent=1 // pred_check
      _
    $region47: #{gru_step.1} parent=1 // pred_check_branch
      %524 = sbr.rel (0) target = $region49
    $region48: #{gru_step.1} parent=1 // pred_region
      %s526 = ssub.s32 128, 64
      %527 = vsyncadd [#allocation4], %s526
      %s528 = sshll.u32 [#allocation11], 4
      %s529 = int_to_ptr.vmem [resolvable:$true] %s528
      %534 = dma.vmem_to_hbm [thread:$0]  %s529, 64, %s6, [#allocation4], 64, 64, 4
    $region49: #{gru_step.1} parent=1 // pred_fallthru
      _
    // Predicated region
    $region50: #{gru_step.1} parent=1 // pred_check
      _
    $region51: #{gru_step.1} parent=1 // pred_check_branch
      %536 = sbr.rel (0) target = $region53
    $region52: #{gru_step.1} parent=1 // pred_region
      %537 = dma.done [#allocation4], 128
    $region53: #{gru_step.1} parent=1 // pred_fallthru
      _
    %538 = vsyncpa [#allocation3], 1
    %539 = vsyncpa [#allocation6], 1
    %540 = vsyncpa [#allocation9], 1
    %541 = vsyncpa [#allocation4], 1

</llo_original>
